<compile_context>
chip_gen: v5e
topology: v5e:2x2
jax: 0.10.0
libtpu: 0.0.40
codegen_flags: <defaults>
</compile_context>

<pallas_src>
import jax
import jax.numpy as jnp
from jax.experimental import pallas as pl
from jax.experimental.pallas import tpu as pltpu


_TOKENS_PER_TILE = 512  # default tokens per grid step (multiple of 128 lanes)


def _round_up(x, m):
    return pl.cdiv(x, m) * m


def _encode_kernel(ids_ref, table_ref, out_ref):
    # ids_ref  : (1, TN)  int32  VMEM  lane-dense token ids for this tile
    # table_ref: (H, V)   bf16   VMEM  fused (embed @ W^T + b)^T, resident
    # out_ref  : (H, TN)  f32    VMEM  transposed output tile (lane-dense)
    h, v = table_ref.shape
    tn = ids_ref.shape[1]

    # Clamp ids (torch would raise on out-of-range; we keep them valid).
    ids = jnp.clip(ids_ref[...], 0, v - 1)                       # (1, TN)

    # One-hot via a single broadcast compare: vocab index runs along sublanes,
    # tokens along lanes -> no cross-lane data movement.
    vocab = jax.lax.broadcasted_iota(jnp.int32, (v, tn), 0)       # (V, TN)
    one_hot = (vocab == ids).astype(table_ref.dtype)              # (V, TN) bf16

    # Single MXU pass per tile; f32 accumulation. Output tile is lane-dense.
    out_ref[...] = jnp.dot(
        table_ref[...], one_hot, preferred_element_type=jnp.float32
    ).astype(out_ref.dtype)                                       # (H, TN)


def _encode_lookup(ids, table_t):
    """ids: (N,) int32, table_t: (H, V) bf16 -> (N, H) f32 via one Pallas call."""
    n = ids.shape[0]
    h, v = table_t.shape

    # Shrink the tile for tiny batches (avoid computing mostly pad tokens),
    # but keep the lane dim a multiple of 128.
    tn = min(_TOKENS_PER_TILE, _round_up(n, 128))
    n_pad = _round_up(n, tn)
    ids_p = jnp.pad(ids.astype(jnp.int32), (0, n_pad - n)).reshape(1, n_pad)

    out_t = pl.pallas_call(
        _encode_kernel,
        out_shape=jax.ShapeDtypeStruct((h, n_pad), jnp.float32),
        grid_spec=pltpu.PrefetchScalarGridSpec(
            num_scalar_prefetch=0,
            grid=(n_pad // tn,),
            in_specs=[
                # Lane-dense id vector, tiled along tokens.
                pl.BlockSpec((1, tn), lambda i: (0, i)),
                # Fused (H, V) table: constant block index -> fetched once,
                # stays resident across all grid steps.
                pl.BlockSpec((h, v), lambda i: (0, 0)),
            ],
            # Transposed output: token axis on lanes -> unmasked dense stores.
            out_specs=pl.BlockSpec((h, tn), lambda i: (0, i)),
        ),
        compiler_params=pltpu.CompilerParams(
            dimension_semantics=("parallel",),   # shard token tiles over TCs
            vmem_limit_bytes=32 * 1024 * 1024,   # explicit budget (v7x-safe)
        ),
    )(ids_p, table_t)

    # (H, N_pad) -> (N, H); transpose/slice is cheap wrapper-side plumbing.
    return out_t[:, :n].T


class EncodeParams:
    """Deterministic parameter construction mirroring the PyTorch __init__."""

    def __init__(self, vocab_size, embedding_dim, hidden_dim, key):
        k_emb, k_w, k_b = jax.random.split(key, 3)
        # nn.init.uniform_(embed.weight, -1.0, 1.0)
        self.embed_weight = jax.random.uniform(
            k_emb, (vocab_size, embedding_dim),
            minval=-1.0, maxval=1.0, dtype=jnp.float32)
        # nn.Linear default init: U(-1/sqrt(fan_in), 1/sqrt(fan_in))
        bound = 1.0 / (embedding_dim ** 0.5)
        self.linear_weight = jax.random.uniform(
            k_w, (hidden_dim, embedding_dim),
            minval=-bound, maxval=bound, dtype=jnp.float32)       # (H, E)
        self.linear_bias = jax.random.uniform(
            k_b, (hidden_dim,), minval=-bound, maxval=bound, dtype=jnp.float32)
        self.embedding_dim = embedding_dim
        self.hidden_dim = hidden_dim
        # One-time fusion of static weights + bias into a (V, H) table:
        #   (embed @ W^T + b)[id] == embed[id] @ W^T + b
        # Stored transposed (H, V) and in bf16: dense VMEM packing, half the
        # residency, MXU-native dtype (f32 accumulation happens in-kernel).
        fused = (self.embed_weight @ self.linear_weight.T
                 + self.linear_bias[None, :])                     # (V, H) f32
        self.fused_table_t = fused.T.astype(jnp.bfloat16)         # (H, V) bf16


def encode_forward(params, a, b):
    """Replicates Encode.forward: returns ((B, Sa, H), (B, Sb, H))."""
    batch = a.shape[0]
    h = params.hidden_dim
    na = a.shape[0] * a.shape[1]
    # Single kernel dispatch for both inputs: one table residency, larger
    # token extent for pipelining / megacore sharding.
    ids = jnp.concatenate([a.reshape(-1), b.reshape(-1)]).astype(jnp.int32)
    out = _encode_lookup(ids, params.fused_table_t)               # (Na+Nb, H)
    out_a = out[:na].reshape(batch, -1, h)
    out_b = out[na:].reshape(batch, -1, h)
    return out_a, out_b


if __name__ == "__main__":
    vocab_size, embedding_dim, hidden_dim = 32, 16, 32
    batch, seq = 2, 8

    key = jax.random.PRNGKey(0)
    k_params, k_a, k_b = jax.random.split(key, 3)
    params = EncodeParams(vocab_size, embedding_dim, hidden_dim, k_params)

    a = jax.random.randint(k_a, (batch, seq), 0, vocab_size, dtype=jnp.int32)
    b = jax.random.randint(k_b, (batch, seq), 0, vocab_size, dtype=jnp.int32)

    out_a, out_b = encode_forward(params, a, b)
    jax.block_until_ready((out_a, out_b))

    assert out_a.shape == (batch, seq, hidden_dim)
    assert out_b.shape == (batch, seq, hidden_dim)

    # (1) Exact check against the bf16-rounded fused table (what the kernel
    #     mathematically computes: one-hot selects table rows exactly).
    table_f32 = params.fused_table_t.astype(jnp.float32).T        # (V, H)
    exact_a = table_f32[a.reshape(-1)].reshape(batch, -1, hidden_dim)
    exact_b = table_f32[b.reshape(-1)].reshape(batch, -1, hidden_dim)
    assert jnp.allclose(out_a, exact_a, atol=1e-6)
    assert jnp.allclose(out_b, exact_b, atol=1e-6)

    # (2) Check against the full-precision unfused reference (torch math);
    #     tolerance loosened for the bf16 table rounding.
    ref_a = (params.embed_weight[a.reshape(-1)] @ params.linear_weight.T
             + params.linear_bias).reshape(batch, -1, hidden_dim)
    ref_b = (params.embed_weight[b.reshape(-1)] @ params.linear_weight.T
             + params.linear_bias).reshape(batch, -1, hidden_dim)
    assert jnp.allclose(out_a, ref_a, rtol=1e-2, atol=3e-2)
    assert jnp.allclose(out_b, ref_b, rtol=1e-2, atol=3e-2)

    print("KERNEL_OK")
</pallas_src>

<mosaic_0001>
module attributes {stable_mosaic.version = 11 : i64} {
  func.func @_encode_kernel(%arg0: i32, %arg1: memref<1x128xi32, #tpu.memory_space<vmem>>, %arg2: memref<32x32xbf16, #tpu.memory_space<vmem>>, %arg3: memref<32x128xf32, #tpu.memory_space<vmem>>) attributes {dimension_semantics = [#tpu.dimension_semantics<parallel>], iteration_bounds = array<i64: 1>, scalar_prefetch = 0 : i64, scratch_operands = 0 : i64, tpu.core_type = #tpu.core_type<tc>, window_params = [{transform_indices = @transform_0, window_bounds = array<i64: 1, 128>}, {pipeline_mode = #tpu.pipeline_mode<synchronous>, transform_indices = @transform_1, window_bounds = array<i64: 32, 32>}, {transform_indices = @transform_2, window_bounds = array<i64: 32, 128>}]} {
    %c0 = arith.constant 0 : index
    %c0_0 = arith.constant 0 : index
    %0 = vector.load %arg1[%c0, %c0_0] : memref<1x128xi32, #tpu.memory_space<vmem>>, vector<1x128xi32>
    %c0_i32 = arith.constant 0 : i32
    %c31_i32 = arith.constant 31 : i32
    %1 = vector.broadcast %c0_i32 : i32 to vector<1x128xi32>
    %2 = arith.maxsi %1, %0 : vector<1x128xi32>
    %3 = vector.broadcast %c31_i32 : i32 to vector<1x128xi32>
    %4 = arith.minsi %3, %2 : vector<1x128xi32>
    %5 = tpu.iota {dimensions = array<i32: 0>} : vector<32x128xi32>
    %6 = vector.broadcast %4 : vector<1x128xi32> to vector<32x128xi32>
    %7 = arith.cmpi eq, %5, %6 : vector<32x128xi32>
    %8 = arith.extui %7 : vector<32x128xi1> to vector<32x128xi32>
    %9 = arith.sitofp %8 : vector<32x128xi32> to vector<32x128xf32>
    %10 = arith.truncf %9 : vector<32x128xf32> to vector<32x128xbf16>
    %c0_1 = arith.constant 0 : index
    %c0_2 = arith.constant 0 : index
    %11 = vector.load %arg2[%c0_1, %c0_2] : memref<32x32xbf16, #tpu.memory_space<vmem>>, vector<32x32xbf16>
    %cst = arith.constant dense<0.000000e+00> : vector<32x128xf32>
    %12 = tpu.matmul %11, %10, %cst {dimension_numbers = #tpu.dot_dimension_numbers<[1], [0], [0], [1], [0, 0, 1, 1], [], []>} : vector<32x32xbf16>, vector<32x128xbf16>, vector<32x128xf32> -> vector<32x128xf32>
    %c0_3 = arith.constant 0 : index
    %c0_4 = arith.constant 0 : index
    %13 = vector.load %arg3[%c0_3, %c0_4] : memref<32x128xf32, #tpu.memory_space<vmem>>, vector<32x128xf32>
    tpu.vector_store %arg3[%c0_3, %c0_4], %12 {strides = array<i32>} : memref<32x128xf32, #tpu.memory_space<vmem>>, vector<32x128xf32>,
    return
  }
  func.func @transform_0(%arg0: i32) -> (i32, i32) {
    %c0_i32 = arith.constant 0 : i32
    %c0_i32_0 = arith.constant 0 : i32
    return %c0_i32, %arg0 : i32, i32
  }
  func.func @transform_1(%arg0: i32) -> (i32, i32) {
    %c0_i32 = arith.constant 0 : i32
    %c0_i32_0 = arith.constant 0 : i32
    %c0_i32_1 = arith.constant 0 : i32
    return %c0_i32, %c0_i32_0 : i32, i32
  }
  func.func @transform_2(%arg0: i32) -> (i32, i32) {
    %c0_i32 = arith.constant 0 : i32
    %c0_i32_0 = arith.constant 0 : i32
    return %c0_i32, %arg0 : i32, i32
  }
}

</mosaic_0001>

<llo_original>
// kernel: tpu_custom_call.1
$region0: #{tpu_custom_call.1}
  #allocation0 [shape = 'u32[]', space=smem, size = 0x4, offset = 0x4, fixed_abs, tag = 'smem constant byte address 0x4 - core index']
  #allocation1 [shape = 'u32[72,128]{1,0:T(1,128)}', space=vmem, size = 0x9000, scoped, tag = 'internal scratch']
  %s0 = inlined_call_operand.hbm [shape: s32[1,128], index: 0, kind: input, shape index: {}]
  %s1 = inlined_call_operand.hbm [shape: bf16[32,32], index: 1, kind: input, shape index: {}]
  %s2 = inlined_call_operand.hbm [shape: f32[32,128], index: 2, kind: output, shape index: {}]
  %s3 = sld [smem:[#allocation0]]
  $region26: #{tpu_custom_call.1} parent=0
    _
  %s5 = ssub.s32 1, %s3
  %s6 = scalar_select 0, %s5, %s3
  $region1: #{tpu_custom_call.1} parent=0
    #allocation2 [shape = 'u8[512]{0}', space=vmem, size = 0x400, scoped, tag = 'input window, operand 0, single buffered']
    #allocation3 [shape = 's32[1]{0}', space=sflag, size = 0x4, scoped, tag = 'scoped memory for tpu_custom_call.1']
    #allocation4 [shape = 's32[1]{0}', space=sflag, size = 0x4, scoped, tag = 'scoped memory for tpu_custom_call.1']
    #allocation5 [shape = 'u8[8192]{0}', space=vmem, size = 0x2000, scoped, tag = 'input window, operand 1, single buffered']
    #allocation6 [shape = 's32[1]{0}', space=sflag, size = 0x4, scoped, tag = 'scoped memory for tpu_custom_call.1']
    #allocation7 [shape = 'u8[16384]{0}', space=vmem, size = 0x4000, scoped, tag = 'output window, operand 0, single buffered']
    %7 = vsyncpa [#allocation3], 0
    %8 = vsyncpa [#allocation6], 0
    %9 = vsyncpa [#allocation4], 0
    // Predicated region
    $region2: #{tpu_custom_call.1} parent=1 // pred_check
      _
    $region3: #{tpu_custom_call.1} parent=1 // pred_check_branch
      %11 = sbr.rel (0) target = $region5
    $region4: #{tpu_custom_call.1} parent=1 // pred_region
      %13 = vsyncadd [#allocation3], 0
      %s15 = sshll.u32 %s0, 4
      %s16 = int_to_ptr.hbm [resolvable:$true] %s15
      %s17 = sshll.u32 [#allocation2], 4
      %s18 = int_to_ptr.vmem [resolvable:$true] %s17
      %20 = dma.hbm_to_vmem [thread:$0]  %s16, 16, %s18, [#allocation3]
    $region5: #{tpu_custom_call.1} parent=1 // pred_fallthru
      _
    // Predicated region
    $region6: #{tpu_custom_call.1} parent=1 // pred_check
      _
    $region7: #{tpu_custom_call.1} parent=1 // pred_check_branch
      %22 = sbr.rel (0) target = $region9
    $region8: #{tpu_custom_call.1} parent=1 // pred_region
      %24 = vsyncadd [#allocation6], 0
      %s25 = sshll.u32 %s1, 4
      %s26 = int_to_ptr.hbm [resolvable:$true] %s25
      %s27 = sshll.u32 [#allocation5], 4
      %s28 = int_to_ptr.vmem [resolvable:$true] %s27
      %33 = dma.hbm_to_vmem [thread:$0]  %s26, 256, %s28, [#allocation6], 64, 64, 4
    $region9: #{tpu_custom_call.1} parent=1 // pred_fallthru
      _
    // Predicated region
    $region10: #{tpu_custom_call.1} parent=1 // pred_check
      _
    $region11: #{tpu_custom_call.1} parent=1 // pred_check_branch
      %35 = sbr.rel (0) target = $region13
    $region12: #{tpu_custom_call.1} parent=1 // pred_region
      %37 = dma.done [#allocation3], 16
    $region13: #{tpu_custom_call.1} parent=1 // pred_fallthru
      _
    // Predicated region
    $region14: #{tpu_custom_call.1} parent=1 // pred_check
      _
    $region15: #{tpu_custom_call.1} parent=1 // pred_check_branch
      %39 = sbr.rel (0) target = $region17
    $region16: #{tpu_custom_call.1} parent=1 // pred_region
      %41 = dma.done [#allocation6], 256
    $region17: #{tpu_custom_call.1} parent=1 // pred_fallthru
      _
    %v43 = vld [vmem:[#allocation2] sm:$0x1]
    %vm44 = vcmp.gt.s32.totalorder %v43, 0
    %v45 = vsel %vm44, %v43, 0
    %vm46 = vcmp.lt.s32.totalorder %v45, 31
    %v47 = vsel %vm46, %v45, 31
    %v48 = vlaneseq
    %v49 = vshrl.u32 %v48, 7
    %v50 = vadd.s32 %v49, 8
    %v51 = vadd.s32 %v49, 16
    %v52 = vadd.s32 %v49, 24
    %v53 = vperm.slane %v47, 0
    %vm54 = vcmp.eq.s32.totalorder %v49, %v53
    %vm55 = vcmp.eq.s32.totalorder %v50, %v53
    %vm56 = vcmp.eq.s32.totalorder %v51, %v53
    %vm57 = vcmp.eq.s32.totalorder %v52, %v53
    %v58 = vsel %vm54, 1, 0
    %v59 = vsel %vm55, 1, 0
    %v60 = vsel %vm56, 1, 0
    %v61 = vsel %vm57, 1, 0
    %v62 = vcvt.s32.f32 %v58
    %v63 = vcvt.s32.f32 %v59
    %v64 = vcvt.s32.f32 %v60
    %v65 = vcvt.s32.f32 %v61
    %v66 = vpack.c.bf16 %v63, %v62
    %v67 = vpack.c.bf16 %v65, %v64
    %v68 = vld [vmem:[#allocation5] sm:$0xf]
    %v69 = vld [vmem:[#allocation5 + $0x4] sm:$0xf]
    %v70 = vld [vmem:[#allocation5 + $0x8] sm:$0xf]
    %v71 = vld [vmem:[#allocation5 + $0xc] sm:$0xf]
    %v76 = vunpack.c.l.b16 %v68
    %v77 = vunpack.c.l.b16 %v69
    %v78 = vunpack.c.l.b16 %v70
    %v79 = vunpack.c.l.b16 %v71
    %v80 = vpack.c.b16 %v77, %v76
    %v81 = vpack.c.b16 %v79, %v78
    %vm82 = vcmask 261120
    %v84 = vsel %vm82, %v80, 0
    %v87 = vsel %vm82, %v81, 0
    %89 = vmatpush.bf16.msra.mxu0 0
    %90 = vmatpush.bf16.msra.mxu0 0
    %91 = vmatpush.bf16.msra.mxu0 0
    %92 = vmatpush.bf16.msra.mxu0 0
    %93 = vmatpush.bf16.msra.mxu0 0
    %94 = vmatpush.bf16.msra.mxu0 0
    %95 = vmatpush.bf16.msra.mxu0 %v67
    %96 = vmatpush.bf16.msra.mxu0 %v66
    %97 = vmatmul.bf16.gmra.mxu0 %v84
    %v98 = vpop.f32.mrf.mxu0
    %v99 = vadd.f32 0.0, %v98
    %v100 = vpop.f32.mrf.mxu0
    %v101 = vadd.f32 0.0, %v100
    %102 = vmatmul.bf16.gmra.mxu0 %v87
    %v103 = vpop.f32.mrf.mxu0
    %v104 = vadd.f32 0.0, %v103
    %v105 = vpop.f32.mrf.mxu0
    %v106 = vadd.f32 0.0, %v105
    %107 = vdwg.mxu0
    %108 = vst [vmem:[#allocation7] sm:$0xff] %v99
    %109 = vst [vmem:[#allocation7 + $0x8] sm:$0xff] %v101
    %110 = vst [vmem:[#allocation7 + $0x10] sm:$0xff] %v104
    %111 = vst [vmem:[#allocation7 + $0x18] sm:$0xff] %v106
    // Predicated region
    $region18: #{tpu_custom_call.1} parent=1 // pred_check
      _
    $region19: #{tpu_custom_call.1} parent=1 // pred_check_branch
      %113 = sbr.rel (0) target = $region21
    $region20: #{tpu_custom_call.1} parent=1 // pred_region
      %115 = vsyncadd [#allocation4], 0
      %s116 = sshll.u32 [#allocation7], 4
      %s117 = int_to_ptr.vmem [resolvable:$true] %s116
      %s118 = sshll.u32 %s2, 4
      %s119 = int_to_ptr.hbm [resolvable:$true] %s118
      %124 = dma.vmem_to_hbm [thread:$0]  %s117, 512, %s119, [#allocation4], 128, 128, 8
    $region21: #{tpu_custom_call.1} parent=1 // pred_fallthru
      _
    // Predicated region
    $region22: #{tpu_custom_call.1} parent=1 // pred_check
      _
    $region23: #{tpu_custom_call.1} parent=1 // pred_check_branch
      %126 = sbr.rel (0) target = $region25
    $region24: #{tpu_custom_call.1} parent=1 // pred_region
      %128 = dma.done [#allocation4], 512
    $region25: #{tpu_custom_call.1} parent=1 // pred_fallthru
      _
    %129 = vsyncpa [#allocation3], 1
    %130 = vsyncpa [#allocation6], 1
    %131 = vsyncpa [#allocation4], 1

</llo_original>
